<compile_context>
chip_gen: v5e
topology: v5e:2x2
jax: 0.10.0
libtpu: 0.0.40
codegen_flags: <defaults>
</compile_context>

<pallas_src>
import functools

import jax
import jax.numpy as jnp
from jax.experimental import pallas as pl
from jax.experimental.pallas import tpu as pltpu

LN_EPS = 1e-5  # nn.LayerNorm default


def _round_up(a, m):
    return ((a + m - 1) // m) * m


def _graph_emb_conv_kernel(x_ref, p_ref, out_ref, *, n_ch, L):
    """Fused 1x1-conv + adaptive-avg-pool + LayerNorm for one batch tile.

    x_ref   : [TILE_B, n_ch*L] f32/bf16  channel-major flattened input
    p_ref   : [R, E]           f32       parameter slab:
                rows 0..n_ch-1 : conv weight rows, pre-scaled by 1/L
                row  n_ch      : conv bias
                row  n_ch+1    : LayerNorm gamma
                row  n_ch+2    : LayerNorm beta
    out_ref : [TILE_B, E]      f32       lane-dense packed output
    """
    p = p_ref[...]                                       # [R, E], resident slab
    x = x_ref[...].astype(jnp.float32)                   # cast bf16 -> f32 on load

    # AdaptiveAvgPool1d(1) + 1x1 conv, fused.  Pooling and the pointwise conv are
    # both linear and commute, so reduce each channel's L columns first and apply
    # the conv as n_ch VPU broadcast MACs (K=2 would waste an MXU push).
    y = p[n_ch:n_ch + 1, :]                              # conv bias, broadcasts
    for c in range(n_ch):                                # static unroll (n_ch == 2)
        s_c = jnp.sum(x[:, c * L:(c + 1) * L], axis=-1, keepdims=True)  # [TILE_B,1]
        y = y + s_c * p[c:c + 1, :]                      # 1/L already folded into p

    # LayerNorm over the embedding (lane) axis.
    mu = jnp.mean(y, axis=-1, keepdims=True)
    d = y - mu
    var = jnp.mean(d * d, axis=-1, keepdims=True)
    normed = d * jax.lax.rsqrt(var + LN_EPS)

    # Dropout: identity in eval mode.
    out_ref[...] = (normed * p[n_ch + 1:n_ch + 2, :]
                    + p[n_ch + 2:n_ch + 3, :]).astype(out_ref.dtype)


def graph_emb_conv(x, conv_weight, conv_bias, ln_weight, ln_bias, *, max_tile_b=1024):
    """Pallas-backed GraphEmb_Conv.forward (eval mode).

    x           : [B, 2, L] f32 or bf16
    conv_weight : PyTorch Conv1d weight layout: [E, 2, 1, 1] / [E, 2, 1] / [E, 2]
    conv_bias   : [E],  ln_weight/ln_bias : [E]
    Returns [B, E] f32.
    """
    B, C, L = x.shape
    E = conv_weight.shape[0]
    w2 = jnp.asarray(conv_weight, jnp.float32).reshape(E, C)   # squeeze k=1 dims

    # Single resident parameter slab (one DMA, one (8,128)-aligned VMEM tile).
    n_rows = max(8, _round_up(C + 3, 8))
    slab = jnp.zeros((n_rows, E), jnp.float32)
    slab = slab.at[:C, :].set(w2.T / jnp.float32(L))           # fold avg-pool 1/L
    slab = slab.at[C, :].set(jnp.asarray(conv_bias, jnp.float32).reshape(E))
    slab = slab.at[C + 1, :].set(jnp.asarray(ln_weight, jnp.float32).reshape(E))
    slab = slab.at[C + 2, :].set(jnp.asarray(ln_bias, jnp.float32).reshape(E))

    # Channel-major 2-D view: columns [c*L, (c+1)*L) hold channel c.  Free reshape.
    x2 = x.reshape(B, C * L)
    x_bytes = x2.dtype.itemsize

    # Batch tile: biggest that (a) keeps double-buffered x+out blocks under ~12 MiB
    # of VMEM, (b) leaves >=2 "parallel" grid steps when B allows (v7x has 2 TCs),
    # (c) is a multiple of 8 (or the whole batch when B <= 8).
    vmem_block_budget = 12 << 20
    if B <= 8:
        tile_b = B                                   # single full block
    else:
        per_row_bytes = C * L * x_bytes + E * 4
        cap_vmem = max((vmem_block_budget // (2 * per_row_bytes)) // 8 * 8, 8)
        two_step = _round_up(pl.cdiv(B, 2), 8)       # >=2 parallel grid steps
        tile_b = max(8, min(max_tile_b, cap_vmem, two_step))
        if tile_b >= B:
            tile_b = B
    num_tiles = pl.cdiv(B, tile_b)

    # Explicit scoped-VMEM limit: double-buffered blocks + param slab, 2x margin.
    need = 2 * tile_b * (C * L * x_bytes + E * 4) + 2 * n_rows * E * 4
    vmem_limit = int(min(max(2 * need, 4 << 20), 32 << 20))

    kernel = functools.partial(_graph_emb_conv_kernel, n_ch=C, L=L)
    return pl.pallas_call(
        kernel,
        out_shape=jax.ShapeDtypeStruct((B, E), jnp.float32),
        grid=(num_tiles,),
        in_specs=[
            # Batch-tiled, sublane/lane-dense input slab.
            # (pipeline_mode=pl.Buffered(3) only if profiling shows exposed DMA.)
            pl.BlockSpec((tile_b, C * L), lambda i: (i, 0)),
            pl.BlockSpec((n_rows, E), lambda i: (0, 0)),        # resident params
        ],
        out_specs=pl.BlockSpec((tile_b, E), lambda i: (i, 0)),
        compiler_params=pltpu.CompilerParams(
            dimension_semantics=("parallel",),
            vmem_limit_bytes=vmem_limit),
    )(x2, slab)


def ref_forward(x, conv_weight, conv_bias, ln_weight, ln_bias):
    """Pure-JAX reference with the original op order (conv -> pool -> LN)."""
    B, C, L = x.shape
    E = conv_weight.shape[0]
    w2 = jnp.asarray(conv_weight, jnp.float32).reshape(E, C)
    y = jnp.einsum("bcl,ec->bel", x.astype(jnp.float32), w2) + conv_bias[None, :, None]
    pooled = jnp.mean(y, axis=-1)                   # AdaptiveAvgPool1d(1).flatten(1)
    mu = jnp.mean(pooled, axis=-1, keepdims=True)
    var = jnp.mean((pooled - mu) ** 2, axis=-1, keepdims=True)
    return (pooled - mu) / jnp.sqrt(var + LN_EPS) * ln_weight + ln_bias


if __name__ == "__main__":
    # 2 input channels fixed by the module; graph_emb chosen lane-dense (128).
    B, C, L, E = 8, 2, 16, 128

    key = jax.random.PRNGKey(0)
    kx, kw, kb, kg, kbe = jax.random.split(key, 5)

    bound = 2.0 ** -0.5                      # Conv1d init bound, fan_in = 2*1*1
    x = jax.random.normal(kx, (B, C, L), jnp.float32)
    conv_weight = jax.random.uniform(kw, (E, C, 1, 1), jnp.float32, -bound, bound)
    conv_bias = jax.random.uniform(kb, (E,), jnp.float32, -bound, bound)
    ln_weight = 1.0 + 0.1 * jax.random.normal(kg, (E,), jnp.float32)
    ln_bias = 0.1 * jax.random.normal(kbe, (E,), jnp.float32)

    ref = ref_forward(x, conv_weight, conv_bias, ln_weight, ln_bias)

    # f32 activation path.
    out = graph_emb_conv(x, conv_weight, conv_bias, ln_weight, ln_bias)
    jax.block_until_ready(out)
    assert out.shape == (B, E)
    assert bool(jnp.all(jnp.isfinite(out)))
    assert bool(jnp.allclose(out, ref, atol=1e-4, rtol=1e-4))

    # bf16 activation path (halves the dominant HBM-read traffic; f32 accumulation
    # happens in-kernel).  Looser tolerance because the inputs themselves are bf16.
    out_bf16 = graph_emb_conv(x.astype(jnp.bfloat16), conv_weight, conv_bias,
                              ln_weight, ln_bias)
    jax.block_until_ready(out_bf16)
    assert out_bf16.shape == (B, E)
    assert bool(jnp.all(jnp.isfinite(out_bf16)))
    assert bool(jnp.allclose(out_bf16, ref, atol=1e-1, rtol=1e-1))

    print("KERNEL_OK")
</pallas_src>

<mosaic_0001>
module attributes {stable_mosaic.version = 11 : i64} {
  func.func @_graph_emb_conv_kernel(%arg0: i32, %arg1: memref<8x32xf32, #tpu.memory_space<vmem>>, %arg2: memref<8x128xf32, #tpu.memory_space<vmem>>, %arg3: memref<8x128xf32, #tpu.memory_space<vmem>>) attributes {dimension_semantics = [#tpu.dimension_semantics<parallel>], iteration_bounds = array<i64: 1>, scalar_prefetch = 0 : i64, scratch_operands = 0 : i64, tpu.core_type = #tpu.core_type<tc>, window_params = [{transform_indices = @transform_0, window_bounds = array<i64: 8, 32>}, {pipeline_mode = #tpu.pipeline_mode<synchronous>, transform_indices = @transform_1, window_bounds = array<i64: 8, 128>}, {transform_indices = @transform_2, window_bounds = array<i64: 8, 128>}]} {
    %c0 = arith.constant 0 : index
    %c0_0 = arith.constant 0 : index
    %0 = vector.load %arg2[%c0, %c0_0] : memref<8x128xf32, #tpu.memory_space<vmem>>, vector<8x128xf32>
    %c0_1 = arith.constant 0 : index
    %c0_2 = arith.constant 0 : index
    %1 = vector.load %arg1[%c0_1, %c0_2] : memref<8x32xf32, #tpu.memory_space<vmem>>, vector<8x32xf32>
    %2 = vector.extract_strided_slice %0 {offsets = [2, 0], sizes = [1, 128], strides = [1, 1]} : vector<8x128xf32> to vector<1x128xf32>
    %3 = vector.extract_strided_slice %1 {offsets = [0, 0], sizes = [8, 16], strides = [1, 1]} : vector<8x32xf32> to vector<8x16xf32>
    %cst = arith.constant dense<0.000000e+00> : vector<8xf32>
    %4 = vector.multi_reduction <add>, %3, %cst [1] : vector<8x16xf32> to vector<8xf32>
    %5 = vector.shape_cast %4 : vector<8xf32> to vector<8x1xf32>
    %6 = vector.extract_strided_slice %0 {offsets = [0, 0], sizes = [1, 128], strides = [1, 1]} : vector<8x128xf32> to vector<1x128xf32>
    %7 = vector.broadcast %5 : vector<8x1xf32> to vector<8x128xf32>
    %8 = vector.broadcast %6 : vector<1x128xf32> to vector<8x128xf32>
    %9 = arith.mulf %7, %8 : vector<8x128xf32>
    %10 = vector.broadcast %2 : vector<1x128xf32> to vector<8x128xf32>
    %11 = arith.addf %10, %9 : vector<8x128xf32>
    %12 = vector.extract_strided_slice %1 {offsets = [0, 16], sizes = [8, 16], strides = [1, 1]} : vector<8x32xf32> to vector<8x16xf32>
    %cst_3 = arith.constant dense<0.000000e+00> : vector<8xf32>
    %13 = vector.multi_reduction <add>, %12, %cst_3 [1] : vector<8x16xf32> to vector<8xf32>
    %14 = vector.shape_cast %13 : vector<8xf32> to vector<8x1xf32>
    %15 = vector.extract_strided_slice %0 {offsets = [1, 0], sizes = [1, 128], strides = [1, 1]} : vector<8x128xf32> to vector<1x128xf32>
    %16 = vector.broadcast %14 : vector<8x1xf32> to vector<8x128xf32>
    %17 = vector.broadcast %15 : vector<1x128xf32> to vector<8x128xf32>
    %18 = arith.mulf %16, %17 : vector<8x128xf32>
    %19 = arith.addf %11, %18 : vector<8x128xf32>
    %cst_4 = arith.constant dense<0.000000e+00> : vector<8xf32>
    %20 = vector.multi_reduction <add>, %19, %cst_4 [1] : vector<8x128xf32> to vector<8xf32>
    %21 = vector.shape_cast %20 : vector<8xf32> to vector<8x1xf32>
    %cst_5 = arith.constant 1.280000e+02 : f32
    %22 = vector.broadcast %cst_5 : f32 to vector<8x1xf32>
    %23 = arith.divf %21, %22 : vector<8x1xf32>
    %24 = vector.broadcast %23 : vector<8x1xf32> to vector<8x128xf32>
    %25 = arith.subf %19, %24 : vector<8x128xf32>
    %26 = arith.mulf %25, %25 : vector<8x128xf32>
    %cst_6 = arith.constant dense<0.000000e+00> : vector<8xf32>
    %27 = vector.multi_reduction <add>, %26, %cst_6 [1] : vector<8x128xf32> to vector<8xf32>
    %28 = vector.shape_cast %27 : vector<8xf32> to vector<8x1xf32>
    %cst_7 = arith.constant 1.280000e+02 : f32
    %29 = vector.broadcast %cst_7 : f32 to vector<8x1xf32>
    %30 = arith.divf %28, %29 : vector<8x1xf32>
    %cst_8 = arith.constant 9.99999974E-6 : f32
    %31 = vector.broadcast %cst_8 : f32 to vector<8x1xf32>
    %32 = arith.addf %30, %31 : vector<8x1xf32>
    %33 = math.rsqrt %32 : vector<8x1xf32>
    %34 = vector.broadcast %33 : vector<8x1xf32> to vector<8x128xf32>
    %35 = arith.mulf %25, %34 : vector<8x128xf32>
    %36 = vector.extract_strided_slice %0 {offsets = [3, 0], sizes = [1, 128], strides = [1, 1]} : vector<8x128xf32> to vector<1x128xf32>
    %37 = vector.broadcast %36 : vector<1x128xf32> to vector<8x128xf32>
    %38 = arith.mulf %35, %37 : vector<8x128xf32>
    %39 = vector.extract_strided_slice %0 {offsets = [4, 0], sizes = [1, 128], strides = [1, 1]} : vector<8x128xf32> to vector<1x128xf32>
    %40 = vector.broadcast %39 : vector<1x128xf32> to vector<8x128xf32>
    %41 = arith.addf %38, %40 : vector<8x128xf32>
    %c0_9 = arith.constant 0 : index
    %c0_10 = arith.constant 0 : index
    %42 = vector.load %arg3[%c0_9, %c0_10] : memref<8x128xf32, #tpu.memory_space<vmem>>, vector<8x128xf32>
    tpu.vector_store %arg3[%c0_9, %c0_10], %41 {strides = array<i32>} : memref<8x128xf32, #tpu.memory_space<vmem>>, vector<8x128xf32>,
    return
  }
  func.func @transform_0(%arg0: i32) -> (i32, i32) {
    %c0_i32 = arith.constant 0 : i32
    %c0_i32_0 = arith.constant 0 : i32
    return %arg0, %c0_i32 : i32, i32
  }
  func.func @transform_1(%arg0: i32) -> (i32, i32) {
    %c0_i32 = arith.constant 0 : i32
    %c0_i32_0 = arith.constant 0 : i32
    %c0_i32_1 = arith.constant 0 : i32
    return %c0_i32, %c0_i32_0 : i32, i32
  }
  func.func @transform_2(%arg0: i32) -> (i32, i32) {
    %c0_i32 = arith.constant 0 : i32
    %c0_i32_0 = arith.constant 0 : i32
    return %arg0, %c0_i32 : i32, i32
  }
}

</mosaic_0001>

<llo_original>
// kernel: tpu_custom_call.1
$region0: #{tpu_custom_call.1}
  #allocation0 [shape = 'u32[]', space=smem, size = 0x4, offset = 0x4, fixed_abs, tag = 'smem constant byte address 0x4 - core index']
  #allocation1 [shape = 'u32[72,128]{1,0:T(1,128)}', space=vmem, size = 0x9000, scoped, tag = 'internal scratch']
  %s0 = inlined_call_operand.hbm [shape: f32[8,32], index: 0, kind: input, shape index: {}]
  %s1 = inlined_call_operand.hbm [shape: f32[8,128], index: 1, kind: input, shape index: {}]
  %s2 = inlined_call_operand.hbm [shape: f32[8,128], index: 2, kind: output, shape index: {}]
  %s3 = sld [smem:[#allocation0]]
  $region26: #{tpu_custom_call.1} parent=0
    _
  %s5 = ssub.s32 1, %s3
  %s6 = scalar_select 0, %s5, %s3
  $region1: #{tpu_custom_call.1} parent=0
    #allocation2 [shape = 'u8[4096]{0}', space=vmem, size = 0x1000, scoped, tag = 'input window, operand 0, single buffered']
    #allocation3 [shape = 's32[1]{0}', space=sflag, size = 0x4, scoped, tag = 'scoped memory for tpu_custom_call.1']
    #allocation4 [shape = 's32[1]{0}', space=sflag, size = 0x4, scoped, tag = 'scoped memory for tpu_custom_call.1']
    #allocation5 [shape = 'u8[4096]{0}', space=vmem, size = 0x1000, scoped, tag = 'input window, operand 1, single buffered']
    #allocation6 [shape = 's32[1]{0}', space=sflag, size = 0x4, scoped, tag = 'scoped memory for tpu_custom_call.1']
    #allocation7 [shape = 'u8[4096]{0}', space=vmem, size = 0x1000, scoped, tag = 'output window, operand 0, single buffered']
    %7 = vsyncpa [#allocation3], 0
    %8 = vsyncpa [#allocation6], 0
    %9 = vsyncpa [#allocation4], 0
    // Predicated region
    $region2: #{tpu_custom_call.1} parent=1 // pred_check
      _
    $region3: #{tpu_custom_call.1} parent=1 // pred_check_branch
      %11 = sbr.rel (0) target = $region5
    $region4: #{tpu_custom_call.1} parent=1 // pred_region
      %13 = vsyncadd [#allocation3], 0
      %s15 = sshll.u32 %s0, 4
      %s16 = int_to_ptr.hbm [resolvable:$true] %s15
      %s17 = sshll.u32 [#allocation2], 4
      %s18 = int_to_ptr.vmem [resolvable:$true] %s17
      %20 = dma.hbm_to_vmem [thread:$0]  %s16, 128, %s18, [#allocation3]
    $region5: #{tpu_custom_call.1} parent=1 // pred_fallthru
      _
    // Predicated region
    $region6: #{tpu_custom_call.1} parent=1 // pred_check
      _
    $region7: #{tpu_custom_call.1} parent=1 // pred_check_branch
      %22 = sbr.rel (0) target = $region9
    $region8: #{tpu_custom_call.1} parent=1 // pred_region
      %24 = vsyncadd [#allocation6], 0
      %s26 = sshll.u32 %s1, 4
      %s27 = int_to_ptr.hbm [resolvable:$true] %s26
      %s28 = sshll.u32 [#allocation5], 4
      %s29 = int_to_ptr.vmem [resolvable:$true] %s28
      %31 = dma.hbm_to_vmem [thread:$0]  %s27, 128, %s29, [#allocation6]
    $region9: #{tpu_custom_call.1} parent=1 // pred_fallthru
      _
    // Predicated region
    $region10: #{tpu_custom_call.1} parent=1 // pred_check
      _
    $region11: #{tpu_custom_call.1} parent=1 // pred_check_branch
      %33 = sbr.rel (0) target = $region13
    $region12: #{tpu_custom_call.1} parent=1 // pred_region
      %35 = dma.done [#allocation3], 128
    $region13: #{tpu_custom_call.1} parent=1 // pred_fallthru
      _
    // Predicated region
    $region14: #{tpu_custom_call.1} parent=1 // pred_check
      _
    $region15: #{tpu_custom_call.1} parent=1 // pred_check_branch
      %37 = sbr.rel (0) target = $region17
    $region16: #{tpu_custom_call.1} parent=1 // pred_region
      %39 = dma.done [#allocation6], 128
    $region17: #{tpu_custom_call.1} parent=1 // pred_fallthru
      _
    %v40 = vld [vmem:[#allocation5] sm:$0xff]
    %v41 = vld [vmem:[#allocation2] sm:$0xff]
    %vm42 = vcmask 130048
    %v43 = vsel %vm42, %v41, 0.0
    %44 = vadd.xlane.f32.xlu0 %v43
    %v45 = vpop.xlane.xlu0 %44
    %v46 = vperm.slane %v40, 0
    %v47 = vmul.f32 %v45, %v46
    %v48 = vperm.slane %v40, 2
    %v49 = vadd.f32 %v48, %v47
    %51 = vrot.lane.b32.xlu0 %v41, 112
    %v52 = vpop.permute.xlu0 %51
    %v54 = vsel %vm42, %v52, 0.0
    %55 = vadd.xlane.f32.xlu0 %v54
    %v56 = vpop.xlane.xlu0 %55
    %v57 = vperm.slane %v40, 1
    %v58 = vmul.f32 %v56, %v57
    %v59 = vadd.f32 %v49, %v58
    %60 = vadd.xlane.f32.xlu0 %v59
    %v61 = vpop.xlane.xlu0 %60
    %v62 = vrcp.pop 128.0
    %v63 = vmul.f32 128.0, %v62
    %v64 = vsub.f32 1.0, %v63
    %v65 = vmul.f32 %v62, %v64
    %v66 = vadd.f32 %v62, %v65
    %vm67 = vweird.f32 %v62
    %v68 = vsel %vm67, %v62, %v66
    %v69 = vmul.f32 %v61, %v68
    %v70 = vsub.f32 %v59, %v69
    %v71 = vmul.f32 %v70, %v70
    %72 = vadd.xlane.f32.xlu0 %v71
    %v73 = vpop.xlane.xlu0 %72
    %v74 = vmul.f32 %v73, %v68
    %v75 = vadd.f32 %v74, 1e-05
    %v76 = vrsqrt.pop %v75
    %v77 = vmul.f32 %v76, %v75
    %v78 = vmul.f32 %v77, %v76
    %v79 = vmul.f32 0.5, %v78
    %v80 = vsub.f32 1.5, %v79
    %v81 = vmul.f32 %v76, %v80
    %vm82 = vweird.f32 %v75
    %vm83 = vweird.f32 %v76
    %vm84 = vmor %vm82, %vm83
    %v85 = vsel %vm84, %v76, %v81
    %v86 = vmul.f32 %v70, %v85
    %v87 = vperm.slane %v40, 3
    %v88 = vmul.f32 %v86, %v87
    %v89 = vperm.slane %v40, 4
    %v90 = vadd.f32 %v88, %v89
    %91 = vst [vmem:[#allocation7] sm:$0xff] %v90
    // Predicated region
    $region18: #{tpu_custom_call.1} parent=1 // pred_check
      _
    $region19: #{tpu_custom_call.1} parent=1 // pred_check_branch
      %93 = sbr.rel (0) target = $region21
    $region20: #{tpu_custom_call.1} parent=1 // pred_region
      %95 = vsyncadd [#allocation4], 0
      %s97 = sshll.u32 [#allocation7], 4
      %s98 = int_to_ptr.vmem [resolvable:$true] %s97
      %s99 = sshll.u32 %s2, 4
      %s100 = int_to_ptr.hbm [resolvable:$true] %s99
      %102 = dma.vmem_to_hbm [thread:$0]  %s98, 128, %s100, [#allocation4]
    $region21: #{tpu_custom_call.1} parent=1 // pred_fallthru
      _
    // Predicated region
    $region22: #{tpu_custom_call.1} parent=1 // pred_check
      _
    $region23: #{tpu_custom_call.1} parent=1 // pred_check_branch
      %104 = sbr.rel (0) target = $region25
    $region24: #{tpu_custom_call.1} parent=1 // pred_region
      %106 = dma.done [#allocation4], 128
    $region25: #{tpu_custom_call.1} parent=1 // pred_fallthru
      _
    %107 = vsyncpa [#allocation3], 1
    %108 = vsyncpa [#allocation6], 1
    %109 = vsyncpa [#allocation4], 1

</llo_original>
